<compile_context>
chip_gen: v5e
topology: v5e:2x2
jax: 0.10.0
libtpu: 0.0.40
codegen_flags: <defaults>
</compile_context>

<pallas_src>
import functools

import jax
import jax.numpy as jnp
from jax import lax
from jax.experimental import pallas as pl
from jax.experimental.pallas import tpu as pltpu


def _vmem_capacity_bytes():
    """Physical VMEM of the attached TPU; conservative fallback (v7x = 64 MiB)."""
    try:
        info = pltpu.get_tpu_info()
        cap = getattr(info, "vmem_capacity_bytes", None)
        if cap:
            return int(cap)
    except Exception:
        pass
    return 64 * 1024 * 1024


def _pick_tk(bc, hw, itemsize, budget_bytes, max_tk):
    """Largest contraction tile (multiple of 128) fitting the VMEM budget.

    Budget accounts for the double-buffered x tile, the double-buffered
    (bc,bc) f32 target / partial-Gram buffers and the f32 accumulator scratch.
    """
    if max_tk is None:
        max_tk = 16 * 1024
    fixed = 3 * bc * bc * 4 + (1 << 20)            # gram buffers + acc + slack
    avail = max(budget_bytes - fixed, 2 * bc * 128 * itemsize)
    tk = avail // (2 * bc * itemsize)
    tk = int(min(tk, max_tk))
    tk = max((tk // 128) * 128, 128)
    if hw <= tk:
        return hw      # single full-width block; no (8,128) divisibility needed
    return tk


def _vmem_limit_bytes(bc, tk, itemsize, cap):
    """Scoped-VMEM limit from actual allocations (+ slack), capped at 75% cap."""
    need = 2 * bc * tk * itemsize + 3 * bc * bc * 4
    return int(min((cap * 3) // 4, max(32 << 20, need + (8 << 20))))


def _gram_mse_kernel(x_ref, tgt_ref, loss_ref, acc_ref, *, scale, hw, tk,
                     has_tail):
    """Single-core path. Grid: (cdiv(hw, tk),) over the contraction axis.

    x_ref:    (BC, tk)  current tile of the flattened feature (native dtype)
    tgt_ref:  (BC, BC)  target Gram (already divided by c*h*w), f32
    loss_ref: (1, 1)    output MSE(gram, target)
    acc_ref:  (BC, BC)  resident f32 accumulator scratch
    """
    k = pl.program_id(0)
    nk = pl.num_programs(0)

    @pl.when(k == 0)
    def _():
        acc_ref[...] = jnp.zeros_like(acc_ref)

    def _accum(x):
        # X_tile @ X_tile.T without materializing a transpose (contract dim 1
        # of both operands); f32 accumulation on the MXU.
        acc_ref[...] += lax.dot_general(
            x, x, dimension_numbers=(((1,), (1,)), ((), ())),
            preferred_element_type=jnp.float32)

    if has_tail:
        @pl.when(k < nk - 1)
        def _():                       # hot path: no mask
            _accum(x_ref[...])

        @pl.when(k == nk - 1)
        def _():                       # masked (partial) tail block only
            x = x_ref[...]
            col = k * tk + lax.broadcasted_iota(jnp.int32, x.shape, 1)
            _accum(jnp.where(col < hw, x, jnp.zeros_like(x)))
    else:
        _accum(x_ref[...])

    @pl.when(k == nk - 1)
    def _():
        gram = acc_ref[...] * scale                      # divide by c*h*w
        diff = gram - tgt_ref[...].astype(jnp.float32)
        loss_ref[...] = jnp.mean(diff * diff, keepdims=True).astype(
            loss_ref.dtype)


def _partial_gram_kernel(x_ref, out_ref, acc_ref, *, hw, tk, spc,
                         first_masked, any_masked):
    """Split path. Grid: (P, spc); axis 0 is "parallel" (sharded across TCs),
    axis 1 is that core's chunk of the contraction. Each core emits one
    partial (BC, BC) Gram; combine + MSE happen in a tiny follow-up JAX op.
    The x index_map clamps out-of-range global blocks; they are fully masked
    here so the duplicated block contributes zero."""
    p = pl.program_id(0)
    k = pl.program_id(1)
    gb = p * spc + k                    # unclamped global block index

    @pl.when(k == 0)
    def _():
        acc_ref[...] = jnp.zeros_like(acc_ref)

    def _accum(x):
        acc_ref[...] += lax.dot_general(
            x, x, dimension_numbers=(((1,), (1,)), ((), ())),
            preferred_element_type=jnp.float32)

    if any_masked:
        @pl.when(gb < first_masked)
        def _():                        # hot path: no mask
            _accum(x_ref[...])

        @pl.when(gb >= first_masked)
        def _():                        # partial tail / duplicated clamped block
            x = x_ref[...]
            col = gb * tk + lax.broadcasted_iota(jnp.int32, x.shape, 1)
            _accum(jnp.where(col < hw, x, jnp.zeros_like(x)))
    else:
        _accum(x_ref[...])

    @pl.when(k == spc - 1)
    def _():
        out_ref[0] = acc_ref[...]


def _gram_mse_pallas(x2d, target_gram, scale, *, max_tk=None, num_splits=None):
    """x2d: (BC, HW) flattened feature (native dtype); target_gram: (BC,BC) f32."""
    bc, hw = x2d.shape
    itemsize = jnp.dtype(x2d.dtype).itemsize
    cap = _vmem_capacity_bytes()
    tk = _pick_tk(bc, hw, itemsize, cap // 2, max_tk)
    steps_total = pl.cdiv(hw, tk)
    vmem_limit = _vmem_limit_bytes(bc, tk, itemsize, cap)

    if num_splits is None:
        # Split the reduction over 2 TensorCores only when each half gets at
        # least two blocks and the input stream dominates the extra partial
        # Gram HBM writeback (so the split never regresses deep, small-HW
        # layers where the Gram is comparable to the input).
        num_splits = 2 if (steps_total >= 4 and
                           bc * hw * itemsize >= 8 * bc * bc * 4) else 1
    num_splits = max(1, min(int(num_splits), int(steps_total)))

    cost = pl.CostEstimate(
        flops=2 * bc * bc * hw,
        transcendentals=0,
        bytes_accessed=bc * hw * itemsize + (num_splits + 1) * bc * bc * 4 + 4)

    if num_splits == 1:
        has_tail = (hw % tk) != 0
        kernel = functools.partial(
            _gram_mse_kernel, scale=scale, hw=hw, tk=tk, has_tail=has_tail)
        loss = pl.pallas_call(
            kernel,
            out_shape=jax.ShapeDtypeStruct((1, 1), jnp.float32),
            grid_spec=pltpu.PrefetchScalarGridSpec(
                num_scalar_prefetch=0,
                grid=(int(steps_total),),
                in_specs=[
                    pl.BlockSpec((bc, tk), lambda k: (0, k)),
                    pl.BlockSpec((bc, bc), lambda k: (0, 0)),
                ],
                out_specs=pl.BlockSpec((1, 1), lambda k: (0, 0)),
                scratch_shapes=[pltpu.VMEM((bc, bc), jnp.float32)],
            ),
            compiler_params=pltpu.CompilerParams(
                dimension_semantics=("arbitrary",),
                vmem_limit_bytes=vmem_limit,
            ),
            cost_estimate=cost,
        )(x2d, target_gram)
        return loss[0, 0]

    # --- 2-way (or P-way) split path: partial Grams per core ---
    p_cores = num_splits
    spc = int(pl.cdiv(steps_total, p_cores))       # blocks per core
    has_tail = (hw % tk) != 0
    has_dup = (spc * p_cores) != steps_total       # clamped duplicate blocks
    any_masked = has_tail or has_dup
    first_masked = int(steps_total - 1) if has_tail else int(steps_total)

    kernel = functools.partial(
        _partial_gram_kernel, hw=hw, tk=tk, spc=spc,
        first_masked=first_masked, any_masked=any_masked)

    partials = pl.pallas_call(
        kernel,
        out_shape=jax.ShapeDtypeStruct((p_cores, bc, bc), jnp.float32),
        grid_spec=pltpu.PrefetchScalarGridSpec(
            num_scalar_prefetch=0,
            grid=(p_cores, spc),
            in_specs=[
                pl.BlockSpec(
                    (bc, tk),
                    lambda p, k: (0, jnp.minimum(p * spc + k,
                                                 steps_total - 1))),
            ],
            out_specs=pl.BlockSpec((1, bc, bc), lambda p, k: (p, 0, 0)),
            scratch_shapes=[pltpu.VMEM((bc, bc), jnp.float32)],
        ),
        compiler_params=pltpu.CompilerParams(
            dimension_semantics=("parallel", "arbitrary"),
            vmem_limit_bytes=vmem_limit,
        ),
        cost_estimate=cost,
    )(x2d)

    # Tiny combine + MSE (bc^2 elements) in plain JAX.
    gram = partials.sum(axis=0) * scale
    diff = gram - target_gram.astype(jnp.float32)
    return jnp.mean(diff * diff)


class StyleLoss:
    """JAX/Pallas port of gatys StyleLoss. Holds a precomputed target Gram."""

    def __init__(self, feature):
        # Parameter setup (glue): target Gram computed in plain JAX, detached.
        b, c, h, w = feature.shape
        feat_ = feature.reshape(b * c, h * w).astype(jnp.float32)
        gram = feat_ @ feat_.T
        self.target = jax.lax.stop_gradient(gram / float(c * h * w))

    def __call__(self, x, *, max_tk=None, num_splits=None):
        b, c, h, w = x.shape
        x2d = x.reshape(b * c, h * w)          # native dtype; no f32 up-cast
        scale = 1.0 / float(c * h * w)
        loss = _gram_mse_pallas(x2d, self.target, scale,
                                max_tk=max_tk, num_splits=num_splits)
        # TODO(synk): stashing self.loss mirrors the nn.Module but is a trap
        # under jit/grad (no custom_vjp on the pallas_call) — training code
        # should return (x, loss) and differentiate a reference formulation.
        self.loss = loss
        return x          # forward returns its input unchanged, like nn.Module


def _reference_loss(x, target, norm):
    b, c, h, w = x.shape
    x2d = x.reshape(b * c, h * w).astype(jnp.float32)
    gram = (x2d @ x2d.T) / norm
    return jnp.mean((gram - target) ** 2)


if __name__ == "__main__":
    key = jax.random.PRNGKey(0)
    k1, k2, k3, k4, k5, k6 = jax.random.split(key, 6)

    # --- Check 1: f32, (2,4,16,16) -> X is (8,256), single-block path A ---
    b, c, h, w = 2, 4, 16, 16
    feature = jax.random.normal(k1, (b, c, h, w), dtype=jnp.float32)
    x = jax.random.normal(k2, (b, c, h, w), dtype=jnp.float32)
    mod = StyleLoss(feature)
    out = jax.block_until_ready(mod(x))
    loss1 = jax.block_until_ready(mod.loss)
    ref1 = _reference_loss(x, mod.target, float(c * h * w))
    assert out.shape == x.shape and jnp.allclose(out, x)
    assert jnp.allclose(loss1, ref1, rtol=1e-5, atol=1e-6), (loss1, ref1)

    # --- Check 2: bf16 input (native-dtype streaming path) ---
    x_bf16 = x.astype(jnp.bfloat16)
    jax.block_until_ready(mod(x_bf16))
    loss2 = jax.block_until_ready(mod.loss)
    ref2 = _reference_loss(x_bf16, mod.target, float(c * h * w))
    assert jnp.allclose(loss2, ref2, rtol=1e-4, atol=1e-5), (loss2, ref2)

    # --- Check 3: hw=196 (14x14), forced tk=128 -> 2 steps, tail mask only on
    #     the last step (hot path unmasked) ---
    b2, c2, h2, w2 = 1, 8, 14, 14
    feature2 = jax.random.normal(k3, (b2, c2, h2, w2), dtype=jnp.float32)
    x2 = jax.random.normal(k4, (b2, c2, h2, w2), dtype=jnp.float32)
    mod2 = StyleLoss(feature2)
    out3 = jax.block_until_ready(mod2(x2, max_tk=128))
    loss3 = jax.block_until_ready(mod2.loss)
    ref3 = _reference_loss(x2, mod2.target, float(c2 * h2 * w2))
    assert jnp.allclose(out3, x2)
    assert jnp.allclose(loss3, ref3, rtol=1e-5, atol=1e-6), (loss3, ref3)

    # --- Check 4: forced 2-way split, even blocks, no mask (1,8,32,32) ---
    b3, c3, h3, w3 = 1, 8, 32, 32
    feature3 = jax.random.normal(k5, (b3, c3, h3, w3), dtype=jnp.float32)
    x3 = jax.random.normal(k6, (b3, c3, h3, w3), dtype=jnp.float32)
    mod3 = StyleLoss(feature3)
    jax.block_until_ready(mod3(x3, max_tk=128, num_splits=2))
    loss4 = jax.block_until_ready(mod3.loss)
    ref4 = _reference_loss(x3, mod3.target, float(c3 * h3 * w3))
    assert jnp.allclose(loss4, ref4, rtol=1e-4, atol=1e-5), (loss4, ref4)

    # --- Check 5: forced 2-way split with tail + duplicated (clamped) block:
    #     hw=324 (18x18), tk=128 -> 3 blocks split as 2/2, last block of the
    #     second core is fully masked out. ---
    b4, c4, h4, w4 = 1, 8, 18, 18
    feature4 = jax.random.normal(k5, (b4, c4, h4, w4), dtype=jnp.float32)
    x4 = jax.random.normal(k6, (b4, c4, h4, w4), dtype=jnp.float32)
    mod4 = StyleLoss(feature4)
    jax.block_until_ready(mod4(x4, max_tk=128, num_splits=2))
    loss5 = jax.block_until_ready(mod4.loss)
    ref5 = _reference_loss(x4, mod4.target, float(c4 * h4 * w4))
    assert jnp.allclose(loss5, ref5, rtol=1e-4, atol=1e-5), (loss5, ref5)

    print("KERNEL_OK")
</pallas_src>

<mosaic_0001>
module attributes {stable_mosaic.version = 11 : i64} {
  func.func @_gram_mse_kernel(%arg0: i32, %arg1: memref<8x256xf32, #tpu.memory_space<vmem>>, %arg2: memref<8x8xf32, #tpu.memory_space<vmem>>, %arg3: memref<1x1xf32, #tpu.memory_space<vmem>>, %arg4: memref<8x8xf32, #tpu.memory_space<vmem>>) attributes {dimension_semantics = [#tpu.dimension_semantics<arbitrary>], iteration_bounds = array<i64: 1>, scalar_prefetch = 0 : i64, scratch_operands = 1 : i64, tpu.core_type = #tpu.core_type<tc>, window_params = [{transform_indices = @transform_0, window_bounds = array<i64: 8, 256>}, {pipeline_mode = #tpu.pipeline_mode<synchronous>, transform_indices = @transform_1, window_bounds = array<i64: 8, 8>}, {pipeline_mode = #tpu.pipeline_mode<synchronous>, transform_indices = @transform_2, window_bounds = array<i64: 1, 1>}]} {
    %c0_i32 = arith.constant 0 : i32
    %0 = arith.cmpi eq, %arg0, %c0_i32 : i32
    %1 = arith.extui %0 : i1 to i32
    %c0_i32_0 = arith.constant 0 : i32
    %2 = arith.cmpi ne, %1, %c0_i32_0 : i32
    scf.if %2 {
      %cst_8 = arith.constant 0.000000e+00 : f32
      %11 = vector.broadcast %cst_8 : f32 to vector<8x8xf32>
      %c0_9 = arith.constant 0 : index
      %c0_10 = arith.constant 0 : index
      %12 = vector.load %arg4[%c0_9, %c0_10] : memref<8x8xf32, #tpu.memory_space<vmem>>, vector<8x8xf32>
      tpu.vector_store %arg4[%c0_9, %c0_10], %11 {strides = array<i32>} : memref<8x8xf32, #tpu.memory_space<vmem>>, vector<8x8xf32>,
    } else {
    }
    %c0 = arith.constant 0 : index
    %c0_1 = arith.constant 0 : index
    %3 = vector.load %arg1[%c0, %c0_1] : memref<8x256xf32, #tpu.memory_space<vmem>>, vector<8x256xf32>
    %c0_2 = arith.constant 0 : index
    %c0_3 = arith.constant 0 : index
    %4 = vector.load %arg4[%c0_2, %c0_3] : memref<8x8xf32, #tpu.memory_space<vmem>>, vector<8x8xf32>
    %cst = arith.constant dense<0.000000e+00> : vector<8x8xf32>
    %5 = tpu.matmul %3, %3, %cst {dimension_numbers = #tpu.dot_dimension_numbers<[1], [1], [0], [0], [0, 0, 1, 0], [], []>} : vector<8x256xf32>, vector<8x256xf32>, vector<8x8xf32> -> vector<8x8xf32>
    %6 = arith.addf %4, %5 : vector<8x8xf32>
    %c0_4 = arith.constant 0 : index
    %c0_5 = arith.constant 0 : index
    %7 = vector.load %arg4[%c0_4, %c0_5] : memref<8x8xf32, #tpu.memory_space<vmem>>, vector<8x8xf32>
    tpu.vector_store %arg4[%c0_4, %c0_5], %6 {strides = array<i32>} : memref<8x8xf32, #tpu.memory_space<vmem>>, vector<8x8xf32>,
    %c0_i32_6 = arith.constant 0 : i32
    %8 = arith.cmpi eq, %arg0, %c0_i32_6 : i32
    %9 = arith.extui %8 : i1 to i32
    %c0_i32_7 = arith.constant 0 : i32
    %10 = arith.cmpi ne, %9, %c0_i32_7 : i32
    scf.if %10 {
      %c0_8 = arith.constant 0 : index
      %c0_9 = arith.constant 0 : index
      %11 = vector.load %arg4[%c0_8, %c0_9] : memref<8x8xf32, #tpu.memory_space<vmem>>, vector<8x8xf32>
      %cst_10 = arith.constant 9.765625E-4 : f32
      %12 = vector.broadcast %cst_10 : f32 to vector<8x8xf32>
      %13 = arith.mulf %11, %12 : vector<8x8xf32>
      %c0_11 = arith.constant 0 : index
      %c0_12 = arith.constant 0 : index
      %14 = vector.load %arg2[%c0_11, %c0_12] : memref<8x8xf32, #tpu.memory_space<vmem>>, vector<8x8xf32>
      %15 = arith.subf %13, %14 : vector<8x8xf32>
      %16 = arith.mulf %15, %15 : vector<8x8xf32>
      %17 = vector.shape_cast %16 : vector<8x8xf32> to vector<1x8x8xf32>
      %cst_13 = arith.constant dense<0.000000e+00> : vector<1xf32>
      %18 = vector.multi_reduction <add>, %17, %cst_13 [1, 2] : vector<1x8x8xf32> to vector<1xf32>
      %19 = vector.shape_cast %18 : vector<1xf32> to vector<1x1x1xf32>
      %20 = vector.extract %19[0, 0, 0] : f32 from vector<1x1x1xf32>
      %21 = vector.broadcast %20 : f32 to vector<1x1xf32>
      %cst_14 = arith.constant 6.400000e+01 : f32
      %22 = vector.broadcast %cst_14 : f32 to vector<1x1xf32>
      %23 = arith.divf %21, %22 : vector<1x1xf32>
      %c0_15 = arith.constant 0 : index
      %c0_16 = arith.constant 0 : index
      %24 = vector.load %arg3[%c0_15, %c0_16] : memref<1x1xf32, #tpu.memory_space<vmem>>, vector<1x1xf32>
      tpu.vector_store %arg3[%c0_15, %c0_16], %23 {strides = array<i32>} : memref<1x1xf32, #tpu.memory_space<vmem>>, vector<1x1xf32>,
    } else {
    }
    return
  }
  func.func @transform_0(%arg0: i32) -> (i32, i32) {
    %c0_i32 = arith.constant 0 : i32
    %c0_i32_0 = arith.constant 0 : i32
    return %c0_i32, %arg0 : i32, i32
  }
  func.func @transform_1(%arg0: i32) -> (i32, i32) {
    %c0_i32 = arith.constant 0 : i32
    %c0_i32_0 = arith.constant 0 : i32
    %c0_i32_1 = arith.constant 0 : i32
    return %c0_i32, %c0_i32_0 : i32, i32
  }
  func.func @transform_2(%arg0: i32) -> (i32, i32) {
    %c0_i32 = arith.constant 0 : i32
    %c0_i32_0 = arith.constant 0 : i32
    %c0_i32_1 = arith.constant 0 : i32
    return %c0_i32, %c0_i32_0 : i32, i32
  }
}

</mosaic_0001>

<llo_original>
// kernel: tpu_custom_call.1
$region0: #{tpu_custom_call.1}
  #allocation0 [shape = 'u32[]', space=smem, size = 0x4, offset = 0x4, fixed_abs, tag = 'smem constant byte address 0x4 - core index']
  #allocation1 [shape = 'u32[72,128]{1,0:T(1,128)}', space=vmem, size = 0x9000, scoped, tag = 'internal scratch']
  #allocation2 [shape = 'f32[8,8]{1,0:T(8,128)}', space=vmem, size = 0x1000, scoped, tag = 'scratch operand']
  %s0 = inlined_call_operand.hbm [shape: f32[8,256], index: 0, kind: input, shape index: {}]
  %s1 = inlined_call_operand.hbm [shape: f32[8,8], index: 1, kind: input, shape index: {}]
  %s2 = inlined_call_operand.hbm [shape: f32[1,1], index: 2, kind: output, shape index: {}]
  %s3 = sld [smem:[#allocation0]]
  $region34: #{tpu_custom_call.1} parent=0
    _
  %s5 = ssub.s32 1, %s3
  %s6 = scalar_select 0, %s5, %s3
  $region1: #{tpu_custom_call.1} parent=0
    #allocation3 [shape = 'u8[8192]{0}', space=vmem, size = 0x2000, scoped, tag = 'input window, operand 0, single buffered']
    #allocation4 [shape = 's32[1]{0}', space=sflag, size = 0x4, scoped, tag = 'scoped memory for tpu_custom_call.1']
    #allocation5 [shape = 's32[1]{0}', space=sflag, size = 0x4, scoped, tag = 'scoped memory for tpu_custom_call.1']
    #allocation6 [shape = 'u8[4096]{0}', space=vmem, size = 0x1000, scoped, tag = 'input window, operand 1, single buffered']
    #allocation7 [shape = 's32[1]{0}', space=sflag, size = 0x4, scoped, tag = 'scoped memory for tpu_custom_call.1']
    #allocation8 [shape = 'u8[512]{0}', space=vmem, size = 0x400, scoped, tag = 'output window, operand 0, single buffered']
    %7 = vsyncpa [#allocation4], 0
    %8 = vsyncpa [#allocation7], 0
    %9 = vsyncpa [#allocation5], 0
    // Predicated region
    $region2: #{tpu_custom_call.1} parent=1 // pred_check
      _
    $region3: #{tpu_custom_call.1} parent=1 // pred_check_branch
      %11 = sbr.rel (0) target = $region5
    $region4: #{tpu_custom_call.1} parent=1 // pred_region
      %13 = vsyncadd [#allocation4], 0
      %s15 = sshll.u32 %s0, 4
      %s16 = int_to_ptr.hbm [resolvable:$true] %s15
      %s17 = sshll.u32 [#allocation3], 4
      %s18 = int_to_ptr.vmem [resolvable:$true] %s17
      %20 = dma.hbm_to_vmem [thread:$0]  %s16, 256, %s18, [#allocation4]
    $region5: #{tpu_custom_call.1} parent=1 // pred_fallthru
      _
    // Predicated region
    $region6: #{tpu_custom_call.1} parent=1 // pred_check
      _
    $region7: #{tpu_custom_call.1} parent=1 // pred_check_branch
      %22 = sbr.rel (0) target = $region9
    $region8: #{tpu_custom_call.1} parent=1 // pred_region
      %24 = vsyncadd [#allocation7], 0
      %s26 = sshll.u32 %s1, 4
      %s27 = int_to_ptr.hbm [resolvable:$true] %s26
      %s28 = sshll.u32 [#allocation6], 4
      %s29 = int_to_ptr.vmem [resolvable:$true] %s28
      %31 = dma.hbm_to_vmem [thread:$0]  %s27, 128, %s29, [#allocation7]
    $region9: #{tpu_custom_call.1} parent=1 // pred_fallthru
      _
    // Predicated region
    $region10: #{tpu_custom_call.1} parent=1 // pred_check
      _
    $region11: #{tpu_custom_call.1} parent=1 // pred_check_branch
      %33 = sbr.rel (0) target = $region13
    $region12: #{tpu_custom_call.1} parent=1 // pred_region
      %35 = dma.done [#allocation4], 256
    $region13: #{tpu_custom_call.1} parent=1 // pred_fallthru
      _
    // Predicated region
    $region14: #{tpu_custom_call.1} parent=1 // pred_check
      _
    $region15: #{tpu_custom_call.1} parent=1 // pred_check_branch
      %37 = sbr.rel (0) target = $region17
    $region16: #{tpu_custom_call.1} parent=1 // pred_region
      %39 = dma.done [#allocation7], 128
    $region17: #{tpu_custom_call.1} parent=1 // pred_fallthru
      _
    %p40 = scmp.eq.s32.totalorder 0, 0
    // Predicated region
    $region18: #{tpu_custom_call.1} parent=1 // pred_check
      %p41 = pneg %p40
    $region19: #{tpu_custom_call.1} parent=1 // pred_check_branch
      %43 = sbr.rel (%p41) target = $region21
    $region20: #{tpu_custom_call.1} parent=1 // pred_region
      %vm44 = vcmask 64512
      %45 = vst.msk [vmem:[#allocation2] sm:$0xff] %vm44, 0.0
    $region21: #{tpu_custom_call.1} parent=1 // pred_fallthru
      _
    %v46 = vld [vmem:[#allocation3] sm:$0xff]
    %v47 = vld [vmem:[#allocation3 + $0x8] sm:$0xff]
    %v48 = vld [vmem:[#allocation2] sm:$0xff]
    %49 = vmatpush.xpose.msra.mxu0 0.0
    %50 = vmatpush.xpose.msra.mxu0 0.0
    %51 = vmatpush.xpose.msra.mxu0 0.0
    %52 = vmatpush.xpose.msra.mxu0 0.0
    %53 = vmatpush.xpose.msra.mxu0 0.0
    %54 = vmatpush.xpose.msra.mxu0 0.0
    %55 = vmatpush.xpose.msra.mxu0 0.0
    %56 = vmatpush.xpose.msra.mxu0 0.0
    %57 = vmatpush.xpose.msra.mxu0 0.0
    %58 = vmatpush.xpose.msra.mxu0 0.0
    %59 = vmatpush.xpose.msra.mxu0 0.0
    %60 = vmatpush.xpose.msra.mxu0 0.0
    %61 = vmatpush.xpose.msra.mxu0 0.0
    %62 = vmatpush.xpose.msra.mxu0 0.0
    %63 = vmatpush.xpose.msra.mxu0 0.0
    %64 = vmatpush.xpose.msra.mxu0 %v46
    %65 = vmatmul.f32.gmra.mxu0 %v46
    %v66 = vpop.f32.mrf.mxu0
    %v67 = vadd.f32 0.0, %v66
    %68 = vdwg.mxu0
    %69 = vmatpush.xpose.msra.mxu0 0.0
    %70 = vmatpush.xpose.msra.mxu0 0.0
    %71 = vmatpush.xpose.msra.mxu0 0.0
    %72 = vmatpush.xpose.msra.mxu0 0.0
    %73 = vmatpush.xpose.msra.mxu0 0.0
    %74 = vmatpush.xpose.msra.mxu0 0.0
    %75 = vmatpush.xpose.msra.mxu0 0.0
    %76 = vmatpush.xpose.msra.mxu0 0.0
    %77 = vmatpush.xpose.msra.mxu0 0.0
    %78 = vmatpush.xpose.msra.mxu0 0.0
    %79 = vmatpush.xpose.msra.mxu0 0.0
    %80 = vmatpush.xpose.msra.mxu0 0.0
    %81 = vmatpush.xpose.msra.mxu0 0.0
    %82 = vmatpush.xpose.msra.mxu0 0.0
    %83 = vmatpush.xpose.msra.mxu0 0.0
    %84 = vmatpush.xpose.msra.mxu0 %v47
    %85 = vmatmul.f32.gmra.mxu0 %v47
    %v86 = vpop.f32.mrf.mxu0
    %v87 = vadd.f32 %v67, %v86
    %88 = vdwg.mxu0
    %v89 = vadd.f32 %v48, %v87
    %vm90 = vcmask 64512
    %91 = vst.msk [vmem:[#allocation2] sm:$0xff] %vm90, %v89
    // Predicated region
    $region22: #{tpu_custom_call.1} parent=1 // pred_check
      %p92 = pneg %p40
    $region23: #{tpu_custom_call.1} parent=1 // pred_check_branch
      %94 = sbr.rel (%p92) target = $region25
    $region24: #{tpu_custom_call.1} parent=1 // pred_region
      %v95 = vld [vmem:[#allocation2] sm:$0xff]
      %v96 = vmul.f32 %v95, 0.0009765625
      %v97 = vld [vmem:[#allocation6] sm:$0xff]
      %v98 = vsub.f32 %v96, %v97
      %v99 = vmul.f32 %v98, %v98
      %v100 = vsel %vm90, %v99, 0.0
      %101 = vadd.xlane.f32.xlu0 %v100
      %v102 = vpop.xlane.xlu0 %101
      %v103 = vrot.slane %v102, 4
      %v104 = vadd.f32 %v102, %v103
      %v105 = vrot.slane %v104, 2
      %v106 = vadd.f32 %v104, %v105
      %v107 = vrot.slane %v106, 1
      %v108 = vadd.f32 %v106, %v107
      %s109 = vtos %v108
      %v110 = vstv %s109
      %v111 = vrcp.pop 64.0
      %v112 = vmul.f32 64.0, %v111
      %v113 = vsub.f32 1.0, %v112
      %v114 = vmul.f32 %v111, %v113
      %v115 = vadd.f32 %v111, %v114
      %vm116 = vweird.f32 %v111
      %v117 = vsel %vm116, %v111, %v115
      %v118 = vmul.f32 %v110, %v117
      %vm119 = vcmask 0
      %120 = vst.msk [vmem:[#allocation8] sm:$0x1] %vm119, %v118
    $region25: #{tpu_custom_call.1} parent=1 // pred_fallthru
      _
    // Predicated region
    $region26: #{tpu_custom_call.1} parent=1 // pred_check
      _
    $region27: #{tpu_custom_call.1} parent=1 // pred_check_branch
      %122 = sbr.rel (0) target = $region29
    $region28: #{tpu_custom_call.1} parent=1 // pred_region
      %124 = vsyncadd [#allocation5], 0
      %s126 = sshll.u32 [#allocation8], 4
      %s127 = int_to_ptr.vmem [resolvable:$true] %s126
      %s128 = sshll.u32 %s2, 4
      %s129 = int_to_ptr.hbm [resolvable:$true] %s128
      %131 = dma.vmem_to_hbm [thread:$0]  %s127, 16, %s129, [#allocation5]
    $region29: #{tpu_custom_call.1} parent=1 // pred_fallthru
      _
    // Predicated region
    $region30: #{tpu_custom_call.1} parent=1 // pred_check
      _
    $region31: #{tpu_custom_call.1} parent=1 // pred_check_branch
      %133 = sbr.rel (0) target = $region33
    $region32: #{tpu_custom_call.1} parent=1 // pred_region
      %135 = dma.done [#allocation5], 16
    $region33: #{tpu_custom_call.1} parent=1 // pred_fallthru
      _
    %136 = vsyncpa [#allocation4], 1
    %137 = vsyncpa [#allocation7], 1
    %138 = vsyncpa [#allocation5], 1

</llo_original>
